<compile_context>
chip_gen: v7x
topology: tpu7x:2x2x1
jax: 0.10.0
libtpu: 0.0.40
codegen_flags: <defaults>
</compile_context>

<pallas_src>
import functools

import jax
import jax.numpy as jnp
from jax.experimental import pallas as pl
from jax.experimental.pallas import tpu as pltpu

_LANE = 128
_SUB = 8
_NEG_BIG = -1e30  # pad-lane bias (post temperature-fold): exp(-1e30 - max) == 0


def _round_up(n: int, m: int) -> int:
    return ((n + m - 1) // m) * m


def gating_kernel(x_ref,
                  w1_ref, b1_ref,
                  w2_ref, b2_ref,
                  w3_ref, b3_ref,
                  wo_ref, bo_ref,
                  scale_ref,
                  o_ref):
    # 3 hidden Linear + ReLU layers (dropout prob = 0.0 -> no-op).
    # MXU runs on bf16 inputs; accumulation and biases stay f32.
    xb = x_ref[...].astype(jnp.bfloat16)
    h = jnp.dot(xb, w1_ref[...], preferred_element_type=jnp.float32) + b1_ref[...]
    h = jnp.maximum(h, 0.0).astype(jnp.bfloat16)
    h = jnp.dot(h, w2_ref[...], preferred_element_type=jnp.float32) + b2_ref[...]
    h = jnp.maximum(h, 0.0).astype(jnp.bfloat16)
    h = jnp.dot(h, w3_ref[...], preferred_element_type=jnp.float32) + b3_ref[...]
    h = jnp.maximum(h, 0.0).astype(jnp.bfloat16)

    # Output Linear (no ReLU).  wo/bo already carry the 1/temperature fold and
    # are lane-padded to 128; padded bias lanes are -1e30 so they vanish under
    # softmax.
    z = jnp.dot(h, wo_ref[...], preferred_element_type=jnp.float32) + bo_ref[...]

    # softmax(logits / temperature, dim=1) scaled by logit_scale (SMEM scalar),
    # with the scale folded into the reciprocal of the denominator.
    z = z - jnp.max(z, axis=1, keepdims=True)
    e = jnp.exp(z)
    inv = pl.reciprocal(jnp.sum(e, axis=1, keepdims=True), approx=True)
    o_ref[...] = (e * (inv * scale_ref[0, 0])).astype(o_ref.dtype)


def prepare_params(params, *, temperature: float):
    """One-time parameter preprocessing (call once, reuse for every forward).

    - casts w1/w2/w3/wo to bf16 (halves weight DMA/VMEM),
    - folds 1/temperature into the output layer (wo, bo),
    - lane-pads wo/bo to a 128-wide output slab (pad bias = -1e30),
    - reshapes logit_scale to a (1,1) SMEM scalar.
    """
    inv_t = jnp.float32(1.0 / float(temperature))
    out_features = int(params["wo"].shape[1])
    out_p = _round_up(out_features, _LANE)
    pad = out_p - out_features

    prepared = {
        "w1": params["w1"].astype(jnp.bfloat16),
        "b1": params["b1"].astype(jnp.float32),
        "w2": params["w2"].astype(jnp.bfloat16),
        "b2": params["b2"].astype(jnp.float32),
        "w3": params["w3"].astype(jnp.bfloat16),
        "b3": params["b3"].astype(jnp.float32),
        # Fold 1/temperature BEFORE padding: pad lanes stay exactly -1e30
        # (no -inf even for very small temperatures).
        "wo": jnp.pad(params["wo"].astype(jnp.float32) * inv_t,
                      ((0, 0), (0, pad))).astype(jnp.bfloat16),
        "bo": jnp.pad(params["bo"].astype(jnp.float32) * inv_t,
                      ((0, 0), (0, pad)), constant_values=_NEG_BIG),
        "scale": params["logit_scale"].reshape(1, 1).astype(jnp.float32),
        "out_features": out_features,
    }
    return prepared


def gating_network_forward(x, prepared, *, block_batch: int = 512,
                           out_dtype=jnp.bfloat16):
    """x: (B, in_features) f32 or bf16.  prepared: output of prepare_params."""
    B, IN = x.shape
    HID = prepared["w1"].shape[1]
    OUT = prepared["out_features"]
    OUT_P = prepared["wo"].shape[1]

    # ---- balanced, 8-aligned batch tiling -------------------------------
    block_batch = max(_SUB, _round_up(int(block_batch), _SUB))
    B8 = _round_up(B, _SUB)
    n_tiles = max(pl.cdiv(B8, block_batch), 1)
    if n_tiles == 1 and B8 >= 256:
        # Give v7x's two TensorCores at least one tile each (cheap elsewhere).
        n_tiles = 2
    TB = _round_up(pl.cdiv(B8, n_tiles), _SUB)
    grid_n = pl.cdiv(B8, TB)
    B_P = grid_n * TB
    if B_P != B:
        x = jnp.pad(x, ((0, B_P - B), (0, 0)))

    # ---- VMEM budget / cost estimate ------------------------------------
    out_itemsize = jnp.dtype(out_dtype).itemsize
    x_tile_bytes = TB * IN * x.dtype.itemsize
    o_tile_bytes = TB * OUT_P * out_itemsize
    weight_bytes = sum(int(prepared[k].size) * prepared[k].dtype.itemsize
                       for k in ("w1", "b1", "w2", "b2", "w3", "b3", "wo", "bo"))
    # Pallas double-buffers every input/output block by default.
    vmem_needed = 2 * (x_tile_bytes + o_tile_bytes + weight_bytes)
    vmem_limit = int(min(max(2 * vmem_needed + (4 << 20), 16 << 20), 120 << 20))

    flops = 2 * B_P * (IN * HID + 2 * HID * HID + HID * OUT_P) + 6 * B_P * OUT_P
    cost = pl.CostEstimate(
        flops=flops,
        transcendentals=B_P * OUT_P,
        bytes_accessed=B_P * IN * x.dtype.itemsize + weight_bytes
        + B_P * OUT_P * out_itemsize,
    )

    def resident(arr):
        # Full-array block, same block index every grid step -> stays in VMEM.
        # TODO(synk): on v7x at production hidden_dim (1024), add
        # pipeline_mode=pl.Buffered(1) so resident weights are single-buffered
        # under the 64 MiB VMEM budget; irrelevant at the shapes used here.
        return pl.BlockSpec(arr.shape, lambda i: (0, 0))

    out_padded = pl.pallas_call(
        gating_kernel,
        out_shape=jax.ShapeDtypeStruct((B_P, OUT_P), out_dtype),
        grid=(grid_n,),
        in_specs=[
            pl.BlockSpec((TB, IN), lambda i: (i, 0)),           # x (batch-tiled)
            resident(prepared["w1"]), resident(prepared["b1"]),
            resident(prepared["w2"]), resident(prepared["b2"]),
            resident(prepared["w3"]), resident(prepared["b3"]),
            resident(prepared["wo"]), resident(prepared["bo"]),
            pl.BlockSpec(memory_space=pltpu.MemorySpace.SMEM),  # logit_scale
        ],
        out_specs=pl.BlockSpec((TB, OUT_P), lambda i: (i, 0)),
        compiler_params=pltpu.CompilerParams(
            dimension_semantics=("parallel",),
            vmem_limit_bytes=vmem_limit),
        cost_estimate=cost,
    )(x, prepared["w1"], prepared["b1"], prepared["w2"], prepared["b2"],
      prepared["w3"], prepared["b3"], prepared["wo"], prepared["bo"],
      prepared["scale"])

    # Consumers that can take the padded (B_P, 128) slab should skip this slice.
    return out_padded[:B, :OUT]


def init_params(key, in_features, hidden_dim, out_features, logit_scale=1.0):
    """Deterministic synthetic parameter init (shapes match the nn.Linear stack)."""
    ks = jax.random.split(key, 8)

    def lin(kw, kb, fan_in, fan_out):
        bound = 1.0 / jnp.sqrt(fan_in)
        w = jax.random.uniform(kw, (fan_in, fan_out), jnp.float32, -bound, bound)
        b = jax.random.uniform(kb, (1, fan_out), jnp.float32, -bound, bound)
        return w, b

    w1, b1 = lin(ks[0], ks[1], in_features, hidden_dim)
    w2, b2 = lin(ks[2], ks[3], hidden_dim, hidden_dim)
    w3, b3 = lin(ks[4], ks[5], hidden_dim, hidden_dim)
    wo, bo = lin(ks[6], ks[7], hidden_dim, out_features)
    return {
        "w1": w1, "b1": b1,
        "w2": w2, "b2": b2,
        "w3": w3, "b3": b3,
        "wo": wo, "bo": bo,
        "logit_scale": jnp.ones((1, 1), jnp.float32) * logit_scale,
    }


def reference_forward(x, params, *, temperature: float):
    h = jnp.maximum(x @ params["w1"] + params["b1"], 0.0)
    h = jnp.maximum(h @ params["w2"] + params["b2"], 0.0)
    h = jnp.maximum(h @ params["w3"] + params["b3"], 0.0)
    logits = h @ params["wo"] + params["bo"]
    p = jax.nn.softmax(logits / temperature, axis=1)
    return p * params["logit_scale"][0, 0]


if __name__ == "__main__":
    # Small shapes consistent with the module: batch=8, in_features=32,
    # hidden_dim=32, out_features=8, temperature=10, logit_scale=1.0.
    # (Hidden dim is deliberately NOT padded to 128: it gains nothing on the
    # VPU and would quadruple MXU push work for layers 2/3.)
    B, IN, HID, OUT = 8, 32, 32, 8
    TEMPERATURE = 10.0

    key = jax.random.PRNGKey(0)
    kx, kp = jax.random.split(key)
    x = jax.random.normal(kx, (B, IN), jnp.float32)
    params = init_params(kp, IN, HID, OUT, logit_scale=1.0)

    prepared = prepare_params(params, temperature=TEMPERATURE)  # one-time prep
    out = gating_network_forward(x, prepared)
    out = jax.block_until_ready(out)

    ref = reference_forward(x, params, temperature=TEMPERATURE)
    assert out.shape == (B, OUT)
    # bf16 MXU inputs + bf16 output store + approx reciprocal -> loose tolerance.
    assert jnp.allclose(out.astype(jnp.float32), ref, atol=1e-2, rtol=2e-2), \
        "mismatch vs reference"

    print("KERNEL_OK")
</pallas_src>

<mosaic_0001>
module attributes {stable_mosaic.version = 11 : i64} {
  func.func @gating_kernel(%arg0: i32, %arg1: memref<8x32xf32, #tpu.memory_space<vmem>>, %arg2: memref<32x32xbf16, #tpu.memory_space<vmem>>, %arg3: memref<1x32xf32, #tpu.memory_space<vmem>>, %arg4: memref<32x32xbf16, #tpu.memory_space<vmem>>, %arg5: memref<1x32xf32, #tpu.memory_space<vmem>>, %arg6: memref<32x32xbf16, #tpu.memory_space<vmem>>, %arg7: memref<1x32xf32, #tpu.memory_space<vmem>>, %arg8: memref<32x128xbf16, #tpu.memory_space<vmem>>, %arg9: memref<1x128xf32, #tpu.memory_space<vmem>>, %arg10: memref<1x1xf32, #tpu.memory_space<smem>>, %arg11: memref<8x128xbf16, #tpu.memory_space<vmem>>) attributes {dimension_semantics = [#tpu.dimension_semantics<parallel>], iteration_bounds = array<i64: 1>, scalar_prefetch = 0 : i64, scratch_operands = 0 : i64, tpu.core_type = #tpu.core_type<tc>, window_params = [{transform_indices = @transform_0, window_bounds = array<i64: 8, 32>}, {pipeline_mode = #tpu.pipeline_mode<synchronous>, transform_indices = @transform_1, window_bounds = array<i64: 32, 32>}, {pipeline_mode = #tpu.pipeline_mode<synchronous>, transform_indices = @transform_2, window_bounds = array<i64: 1, 32>}, {pipeline_mode = #tpu.pipeline_mode<synchronous>, transform_indices = @transform_3, window_bounds = array<i64: 32, 32>}, {pipeline_mode = #tpu.pipeline_mode<synchronous>, transform_indices = @transform_4, window_bounds = array<i64: 1, 32>}, {pipeline_mode = #tpu.pipeline_mode<synchronous>, transform_indices = @transform_5, window_bounds = array<i64: 32, 32>}, {pipeline_mode = #tpu.pipeline_mode<synchronous>, transform_indices = @transform_6, window_bounds = array<i64: 1, 32>}, {pipeline_mode = #tpu.pipeline_mode<synchronous>, transform_indices = @transform_7, window_bounds = array<i64: 32, 128>}, {pipeline_mode = #tpu.pipeline_mode<synchronous>, transform_indices = @transform_8, window_bounds = array<i64: 1, 128>}, {transform_indices = @transform_9, window_bounds = array<i64: 1, 1>}, {transform_indices = @transform_10, window_bounds = array<i64: 8, 128>}]} {
    %c0 = arith.constant 0 : index
    %c0_0 = arith.constant 0 : index
    %0 = vector.load %arg1[%c0, %c0_0] : memref<8x32xf32, #tpu.memory_space<vmem>>, vector<8x32xf32>
    %1 = arith.truncf %0 : vector<8x32xf32> to vector<8x32xbf16>
    %c0_1 = arith.constant 0 : index
    %c0_2 = arith.constant 0 : index
    %2 = vector.load %arg2[%c0_1, %c0_2] : memref<32x32xbf16, #tpu.memory_space<vmem>>, vector<32x32xbf16>
    %cst = arith.constant dense<0.000000e+00> : vector<8x32xf32>
    %3 = tpu.matmul %1, %2, %cst {dimension_numbers = #tpu.dot_dimension_numbers<[1], [0], [0], [1], [0, 0, 1, 1], [], []>} : vector<8x32xbf16>, vector<32x32xbf16>, vector<8x32xf32> -> vector<8x32xf32>
    %c0_3 = arith.constant 0 : index
    %c0_4 = arith.constant 0 : index
    %4 = vector.load %arg3[%c0_3, %c0_4] : memref<1x32xf32, #tpu.memory_space<vmem>>, vector<1x32xf32>
    %5 = vector.broadcast %4 : vector<1x32xf32> to vector<8x32xf32>
    %6 = arith.addf %3, %5 : vector<8x32xf32>
    %cst_5 = arith.constant 0.000000e+00 : f32
    %7 = vector.broadcast %cst_5 : f32 to vector<8x32xf32>
    %8 = arith.maximumf %6, %7 : vector<8x32xf32>
    %9 = arith.truncf %8 : vector<8x32xf32> to vector<8x32xbf16>
    %c0_6 = arith.constant 0 : index
    %c0_7 = arith.constant 0 : index
    %10 = vector.load %arg4[%c0_6, %c0_7] : memref<32x32xbf16, #tpu.memory_space<vmem>>, vector<32x32xbf16>
    %cst_8 = arith.constant dense<0.000000e+00> : vector<8x32xf32>
    %11 = tpu.matmul %9, %10, %cst_8 {dimension_numbers = #tpu.dot_dimension_numbers<[1], [0], [0], [1], [0, 0, 1, 1], [], []>} : vector<8x32xbf16>, vector<32x32xbf16>, vector<8x32xf32> -> vector<8x32xf32>
    %c0_9 = arith.constant 0 : index
    %c0_10 = arith.constant 0 : index
    %12 = vector.load %arg5[%c0_9, %c0_10] : memref<1x32xf32, #tpu.memory_space<vmem>>, vector<1x32xf32>
    %13 = vector.broadcast %12 : vector<1x32xf32> to vector<8x32xf32>
    %14 = arith.addf %11, %13 : vector<8x32xf32>
    %cst_11 = arith.constant 0.000000e+00 : f32
    %15 = vector.broadcast %cst_11 : f32 to vector<8x32xf32>
    %16 = arith.maximumf %14, %15 : vector<8x32xf32>
    %17 = arith.truncf %16 : vector<8x32xf32> to vector<8x32xbf16>
    %c0_12 = arith.constant 0 : index
    %c0_13 = arith.constant 0 : index
    %18 = vector.load %arg6[%c0_12, %c0_13] : memref<32x32xbf16, #tpu.memory_space<vmem>>, vector<32x32xbf16>
    %cst_14 = arith.constant dense<0.000000e+00> : vector<8x32xf32>
    %19 = tpu.matmul %17, %18, %cst_14 {dimension_numbers = #tpu.dot_dimension_numbers<[1], [0], [0], [1], [0, 0, 1, 1], [], []>} : vector<8x32xbf16>, vector<32x32xbf16>, vector<8x32xf32> -> vector<8x32xf32>
    %c0_15 = arith.constant 0 : index
    %c0_16 = arith.constant 0 : index
    %20 = vector.load %arg7[%c0_15, %c0_16] : memref<1x32xf32, #tpu.memory_space<vmem>>, vector<1x32xf32>
    %21 = vector.broadcast %20 : vector<1x32xf32> to vector<8x32xf32>
    %22 = arith.addf %19, %21 : vector<8x32xf32>
    %cst_17 = arith.constant 0.000000e+00 : f32
    %23 = vector.broadcast %cst_17 : f32 to vector<8x32xf32>
    %24 = arith.maximumf %22, %23 : vector<8x32xf32>
    %25 = arith.truncf %24 : vector<8x32xf32> to vector<8x32xbf16>
    %c0_18 = arith.constant 0 : index
    %c0_19 = arith.constant 0 : index
    %26 = vector.load %arg8[%c0_18, %c0_19] : memref<32x128xbf16, #tpu.memory_space<vmem>>, vector<32x128xbf16>
    %cst_20 = arith.constant dense<0.000000e+00> : vector<8x128xf32>
    %27 = tpu.matmul %25, %26, %cst_20 {dimension_numbers = #tpu.dot_dimension_numbers<[1], [0], [0], [1], [0, 0, 1, 1], [], []>} : vector<8x32xbf16>, vector<32x128xbf16>, vector<8x128xf32> -> vector<8x128xf32>
    %c0_21 = arith.constant 0 : index
    %c0_22 = arith.constant 0 : index
    %28 = vector.load %arg9[%c0_21, %c0_22] : memref<1x128xf32, #tpu.memory_space<vmem>>, vector<1x128xf32>
    %29 = vector.broadcast %28 : vector<1x128xf32> to vector<8x128xf32>
    %30 = arith.addf %27, %29 : vector<8x128xf32>
    %cst_23 = arith.constant dense<0xFF800000> : vector<8xf32>
    %31 = vector.multi_reduction <maximumf>, %30, %cst_23 [1] : vector<8x128xf32> to vector<8xf32>
    %32 = vector.shape_cast %31 : vector<8xf32> to vector<8x1xf32>
    %33 = vector.broadcast %32 : vector<8x1xf32> to vector<8x128xf32>
    %34 = arith.subf %30, %33 : vector<8x128xf32>
    %35 = math.exp %34 : vector<8x128xf32>
    %cst_24 = arith.constant dense<0.000000e+00> : vector<8xf32>
    %36 = vector.multi_reduction <add>, %35, %cst_24 [1] : vector<8x128xf32> to vector<8xf32>
    %37 = vector.shape_cast %36 : vector<8xf32> to vector<8x1xf32>
    %38 = tpu.reciprocal %37 {approx = true} : vector<8x1xf32> -> vector<8x1xf32>
    %c0_25 = arith.constant 0 : index
    %c0_26 = arith.constant 0 : index
    %39 = memref.load %arg10[%c0_25, %c0_26] : memref<1x1xf32, #tpu.memory_space<smem>>
    %40 = vector.broadcast %39 : f32 to vector<8x1xf32>
    %41 = arith.mulf %38, %40 : vector<8x1xf32>
    %42 = vector.broadcast %41 : vector<8x1xf32> to vector<8x128xf32>
    %43 = arith.mulf %35, %42 : vector<8x128xf32>
    %44 = arith.truncf %43 : vector<8x128xf32> to vector<8x128xbf16>
    %c0_27 = arith.constant 0 : index
    %c0_28 = arith.constant 0 : index
    %45 = vector.load %arg11[%c0_27, %c0_28] : memref<8x128xbf16, #tpu.memory_space<vmem>>, vector<8x128xbf16>
    tpu.vector_store %arg11[%c0_27, %c0_28], %44 {strides = array<i32>} : memref<8x128xbf16, #tpu.memory_space<vmem>>, vector<8x128xbf16>,
    return
  }
  func.func @transform_0(%arg0: i32) -> (i32, i32) {
    %c0_i32 = arith.constant 0 : i32
    %c0_i32_0 = arith.constant 0 : i32
    return %arg0, %c0_i32 : i32, i32
  }
  func.func @transform_1(%arg0: i32) -> (i32, i32) {
    %c0_i32 = arith.constant 0 : i32
    %c0_i32_0 = arith.constant 0 : i32
    %c0_i32_1 = arith.constant 0 : i32
    return %c0_i32, %c0_i32_0 : i32, i32
  }
  func.func @transform_2(%arg0: i32) -> (i32, i32) {
    %c0_i32 = arith.constant 0 : i32
    %c0_i32_0 = arith.constant 0 : i32
    %c0_i32_1 = arith.constant 0 : i32
    return %c0_i32, %c0_i32_0 : i32, i32
  }
  func.func @transform_3(%arg0: i32) -> (i32, i32) {
    %c0_i32 = arith.constant 0 : i32
    %c0_i32_0 = arith.constant 0 : i32
    %c0_i32_1 = arith.constant 0 : i32
    return %c0_i32, %c0_i32_0 : i32, i32
  }
  func.func @transform_4(%arg0: i32) -> (i32, i32) {
    %c0_i32 = arith.constant 0 : i32
    %c0_i32_0 = arith.constant 0 : i32
    %c0_i32_1 = arith.constant 0 : i32
    return %c0_i32, %c0_i32_0 : i32, i32
  }
  func.func @transform_5(%arg0: i32) -> (i32, i32) {
    %c0_i32 = arith.constant 0 : i32
    %c0_i32_0 = arith.constant 0 : i32
    %c0_i32_1 = arith.constant 0 : i32
    return %c0_i32, %c0_i32_0 : i32, i32
  }
  func.func @transform_6(%arg0: i32) -> (i32, i32) {
    %c0_i32 = arith.constant 0 : i32
    %c0_i32_0 = arith.constant 0 : i32
    %c0_i32_1 = arith.constant 0 : i32
    return %c0_i32, %c0_i32_0 : i32, i32
  }
  func.func @transform_7(%arg0: i32) -> (i32, i32) {
    %c0_i32 = arith.constant 0 : i32
    %c0_i32_0 = arith.constant 0 : i32
    %c0_i32_1 = arith.constant 0 : i32
    return %c0_i32, %c0_i32_0 : i32, i32
  }
  func.func @transform_8(%arg0: i32) -> (i32, i32) {
    %c0_i32 = arith.constant 0 : i32
    %c0_i32_0 = arith.constant 0 : i32
    %c0_i32_1 = arith.constant 0 : i32
    return %c0_i32, %c0_i32_0 : i32, i32
  }
  func.func @transform_9(%arg0: i32) -> (i32, i32) {
    %c0_i32 = arith.constant 0 : i32
    %c0_i32_0 = arith.constant 0 : i32
    %c0_i32_1 = arith.constant 0 : i32
    return %c0_i32, %c0_i32_0 : i32, i32
  }
  func.func @transform_10(%arg0: i32) -> (i32, i32) {
    %c0_i32 = arith.constant 0 : i32
    %c0_i32_0 = arith.constant 0 : i32
    return %arg0, %c0_i32 : i32, i32
  }
}

</mosaic_0001>

<llo_original>
// kernel: tpu_custom_call.1
$region0: #{tpu_custom_call.1}
  #allocation0 [shape = 'u32[]', space=smem, size = 0x4, offset = 0x4, fixed_abs, tag = 'smem constant byte address 0x4 - core index']
  #allocation1 [shape = 'u32[144,128]{1,0:T(1,128)}', space=vmem, size = 0x12000, scoped, tag = 'internal scratch']
  #allocation2 [shape = 'f32[1,1]{1,0:T(1,128)S(6)}', space=smem, size = 0x200, scoped, tag = 'scoped memory for tpu_custom_call.1']
  %s0 = inlined_call_operand.hbm [shape: f32[8,32], index: 0, kind: input, shape index: {}]
  %s1 = inlined_call_operand.hbm [shape: bf16[32,32], index: 1, kind: input, shape index: {}]
  %s2 = inlined_call_operand.vmem [shape: f32[1,32], index: 2, kind: input, shape index: {}]
  %s3 = inlined_call_operand.hbm [shape: bf16[32,32], index: 3, kind: input, shape index: {}]
  %s4 = inlined_call_operand.vmem [shape: f32[1,32], index: 4, kind: input, shape index: {}]
  %s5 = inlined_call_operand.vmem [shape: bf16[32,32], index: 5, kind: input, shape index: {}]
  %s6 = inlined_call_operand.vmem [shape: f32[1,32], index: 6, kind: input, shape index: {}]
  %s7 = inlined_call_operand.hbm [shape: bf16[32,128], index: 7, kind: input, shape index: {}]
  %s8 = inlined_call_operand.vmem [shape: f32[1,128], index: 8, kind: input, shape index: {}]
  %s9 = inlined_call_operand.<no memory space> [shape: f32[1,1], index: 9, kind: input, shape index: {}]
  %s10 = inlined_call_operand.hbm [shape: bf16[8,128], index: 10, kind: output, shape index: {}]
  %s11 = sld [smem:[#allocation0]]
  $region66: #{tpu_custom_call.1} parent=0
    _
  %s13 = ssub.s32 1, %s11
  %s14 = scalar_select 0, %s13, %s11
  %15 = sst [smem:[#allocation2]] %s9
  $region1: #{tpu_custom_call.1} parent=0
    #allocation3 [shape = 'u8[4096]{0}', space=vmem, size = 0x1000, scoped, tag = 'input window, operand 0, single buffered']
    #allocation4 [shape = 's32[1]{0}', space=sflag, size = 0x4, scoped, tag = 'scoped memory for tpu_custom_call.1']
    #allocation5 [shape = 's32[1]{0}', space=sflag, size = 0x4, scoped, tag = 'scoped memory for tpu_custom_call.1']
    #allocation6 [shape = 'u8[8192]{0}', space=vmem, size = 0x2000, scoped, tag = 'input window, operand 1, single buffered']
    #allocation7 [shape = 's32[1]{0}', space=sflag, size = 0x4, scoped, tag = 'scoped memory for tpu_custom_call.1']
    #allocation8 [shape = 'u8[8192]{0}', space=vmem, size = 0x2000, scoped, tag = 'input window, operand 3, single buffered']
    #allocation9 [shape = 'u8[8192]{0}', space=vmem, size = 0x2000, scoped, tag = 'input window, operand 7, single buffered']
    #allocation10 [shape = 's32[1]{0}', space=sflag, size = 0x4, scoped, tag = 'scoped memory for tpu_custom_call.1']
    #allocation11 [shape = 'u8[2048]{0}', space=vmem, size = 0x800, scoped, tag = 'output window, operand 0, single buffered']
    %16 = vsyncpa [#allocation4], 0
    %17 = vsyncpa [#allocation7], 0
    %18 = vsyncpa [#allocation10], 0
    %19 = vsyncpa [#allocation5], 0
    // Predicated region
    $region2: #{tpu_custom_call.1} parent=1 // pred_check
      _
    $region3: #{tpu_custom_call.1} parent=1 // pred_check_branch
      %21 = sbr.rel (0) target = $region5
    $region4: #{tpu_custom_call.1} parent=1 // pred_region
      %s23 = ssub.s32 128, 128
      %24 = vsyncadd [#allocation4], %s23
      %s26 = sshll.u32 [#allocation3], 4
      %s27 = int_to_ptr.vmem [resolvable:$true] %s26
      %29 = dma.hbm_to_vmem [thread:$0]  %s0, 128, %s27, [#allocation4]
    $region5: #{tpu_custom_call.1} parent=1 // pred_fallthru
      _
    // Predicated region
    $region6: #{tpu_custom_call.1} parent=1 // pred_check
      _
    $region7: #{tpu_custom_call.1} parent=1 // pred_check_branch
      %31 = sbr.rel (0) target = $region9
    $region8: #{tpu_custom_call.1} parent=1 // pred_region
      %s33 = ssub.s32 256, 256
      %34 = vsyncadd [#allocation7], %s33
      %s35 = sshll.u32 [#allocation6], 4
      %s36 = int_to_ptr.vmem [resolvable:$true] %s35
      %41 = dma.hbm_to_vmem [thread:$0]  %s1, 256, %s36, [#allocation7], 64, 64, 4
    $region9: #{tpu_custom_call.1} parent=1 // pred_fallthru
      _
    // Predicated region
    $region10: #{tpu_custom_call.1} parent=1 // pred_check
      _
    $region11: #{tpu_custom_call.1} parent=1 // pred_check_branch
      %43 = sbr.rel (0) target = $region13
    $region12: #{tpu_custom_call.1} parent=1 // pred_region
      _
    $region13: #{tpu_custom_call.1} parent=1 // pred_fallthru
      _
    // Predicated region
    $region14: #{tpu_custom_call.1} parent=1 // pred_check
      _
    $region15: #{tpu_custom_call.1} parent=1 // pred_check_branch
      %45 = sbr.rel (0) target = $region17
    $region16: #{tpu_custom_call.1} parent=1 // pred_region
      %s47 = ssub.s32 256, 256
      %48 = vsyncadd [#allocation7], %s47
      %s49 = sshll.u32 [#allocation8], 4
      %s50 = int_to_ptr.vmem [resolvable:$true] %s49
      %55 = dma.hbm_to_vmem [thread:$0]  %s3, 256, %s50, [#allocation7], 64, 64, 4
    $region17: #{tpu_custom_call.1} parent=1 // pred_fallthru
      _
    // Predicated region
    $region18: #{tpu_custom_call.1} parent=1 // pred_check
      _
    $region19: #{tpu_custom_call.1} parent=1 // pred_check_branch
      %57 = sbr.rel (0) target = $region21
    $region20: #{tpu_custom_call.1} parent=1 // pred_region
      _
    $region21: #{tpu_custom_call.1} parent=1 // pred_fallthru
      _
    // Predicated region
    $region22: #{tpu_custom_call.1} parent=1 // pred_check
      _
    $region23: #{tpu_custom_call.1} parent=1 // pred_check_branch
      %59 = sbr.rel (0) target = $region25
    $region24: #{tpu_custom_call.1} parent=1 // pred_region
      _
    $region25: #{tpu_custom_call.1} parent=1 // pred_fallthru
      _
    // Predicated region
    $region26: #{tpu_custom_call.1} parent=1 // pred_check
      _
    $region27: #{tpu_custom_call.1} parent=1 // pred_check_branch
      %61 = sbr.rel (0) target = $region29
    $region28: #{tpu_custom_call.1} parent=1 // pred_region
      _
    $region29: #{tpu_custom_call.1} parent=1 // pred_fallthru
      _
    // Predicated region
    $region30: #{tpu_custom_call.1} parent=1 // pred_check
      _
    $region31: #{tpu_custom_call.1} parent=1 // pred_check_branch
      %63 = sbr.rel (0) target = $region33
    $region32: #{tpu_custom_call.1} parent=1 // pred_region
      %s65 = ssub.s32 256, 256
      %66 = vsyncadd [#allocation10], %s65
      %s67 = sshll.u32 [#allocation9], 4
      %s68 = int_to_ptr.vmem [resolvable:$true] %s67
      %73 = dma.hbm_to_vmem [thread:$0]  %s7, 256, %s68, [#allocation10], 64, 64, 4
    $region33: #{tpu_custom_call.1} parent=1 // pred_fallthru
      _
    // Predicated region
    $region34: #{tpu_custom_call.1} parent=1 // pred_check
      _
    $region35: #{tpu_custom_call.1} parent=1 // pred_check_branch
      %75 = sbr.rel (0) target = $region37
    $region36: #{tpu_custom_call.1} parent=1 // pred_region
      _
    $region37: #{tpu_custom_call.1} parent=1 // pred_fallthru
      _
    // Predicated region
    $region38: #{tpu_custom_call.1} parent=1 // pred_check
      _
    $region39: #{tpu_custom_call.1} parent=1 // pred_check_branch
      %77 = sbr.rel (0) target = $region41
    $region40: #{tpu_custom_call.1} parent=1 // pred_region
      _
    $region41: #{tpu_custom_call.1} parent=1 // pred_fallthru
      _
    // Predicated region
    $region42: #{tpu_custom_call.1} parent=1 // pred_check
      _
    $region43: #{tpu_custom_call.1} parent=1 // pred_check_branch
      %79 = sbr.rel (0) target = $region45
    $region44: #{tpu_custom_call.1} parent=1 // pred_region
      %80 = dma.done [#allocation4], 128
    $region45: #{tpu_custom_call.1} parent=1 // pred_fallthru
      _
    // Predicated region
    $region46: #{tpu_custom_call.1} parent=1 // pred_check
      _
    $region47: #{tpu_custom_call.1} parent=1 // pred_check_branch
      %82 = sbr.rel (0) target = $region49
    $region48: #{tpu_custom_call.1} parent=1 // pred_region
      %83 = dma.done [#allocation7], 256
    $region49: #{tpu_custom_call.1} parent=1 // pred_fallthru
      _
    // Predicated region
    $region50: #{tpu_custom_call.1} parent=1 // pred_check
      _
    $region51: #{tpu_custom_call.1} parent=1 // pred_check_branch
      %85 = sbr.rel (0) target = $region53
    $region52: #{tpu_custom_call.1} parent=1 // pred_region
      %86 = dma.done [#allocation7], 256
    $region53: #{tpu_custom_call.1} parent=1 // pred_fallthru
      _
    // Predicated region
    $region54: #{tpu_custom_call.1} parent=1 // pred_check
      _
    $region55: #{tpu_custom_call.1} parent=1 // pred_check_branch
      %88 = sbr.rel (0) target = $region57
    $region56: #{tpu_custom_call.1} parent=1 // pred_region
      %89 = dma.done [#allocation10], 256
    $region57: #{tpu_custom_call.1} parent=1 // pred_fallthru
      _
    %v91 = vld [vmem:[#allocation3] sm:$0xff]
    %v92 = vpack.c.bf16 %v91, %v91
    %v93 = vld [vmem:[#allocation6] sm:$0xf]
    %v94 = vld [vmem:[#allocation6 + $0x4] sm:$0xf]
    %v95 = vld [vmem:[#allocation6 + $0x8] sm:$0xf]
    %v96 = vld [vmem:[#allocation6 + $0xc] sm:$0xf]
    %v97 = vld [vmem:[%s2] sm:$0x1]
    %v99 = vlaneseq
    %v100 = vshrl.u32 %v99, 7
    %v101 = vsub.s32 0, %v100
    %v102 = vrot.slane %v97, %v101
    %v108 = vunpack.c.l.b16 %v93
    %v109 = vunpack.c.l.b16 %v94
    %v110 = vunpack.c.l.b16 %v95
    %v111 = vunpack.c.l.b16 %v96
    %v112 = vpack.c.b16 %v109, %v108
    %v113 = vpack.c.b16 %v111, %v110
    %vm116 = vcmask 261120
    %v118 = vsel %vm116, %v92, 0
    %120 = vmatprep.subr.bf16.mxu0 0
    %121 = vmatpush1.bf16.msra.mxu0 %v112
    %122 = vmatprep.subr.bf16.mxu0 0
    %123 = vmatpush1.bf16.msra.mxu0 %v113
    %124 = vmatprep.subr.bf16.mxu0 0
    %125 = vmatpush1.bf16.msra.mxu0 0
    %126 = vmatprep.subr.bf16.mxu0 0
    %127 = vmatpush1.bf16.msra.mxu0 0
    %128 = vmatprep.subr.bf16.mxu0 0
    %129 = vmatpush1.bf16.msra.mxu0 0
    %130 = vmatprep.subr.bf16.mxu0 0
    %131 = vmatpush1.bf16.msra.mxu0 0
    %132 = vmatprep.subr.bf16.mxu0 0
    %133 = vmatpush1.bf16.msra.mxu0 0
    %134 = vmatprep.subr.bf16.mxu0 0
    %135 = vmatpush1.bf16.msra.mxu0 0
    %136 = vmatprep.subr.bf16.mxu0 0
    %137 = vmatpush1.bf16.msra.mxu0 0
    %138 = vmatprep.subr.bf16.mxu0 0
    %139 = vmatpush1.bf16.msra.mxu0 0
    %140 = vmatprep.subr.bf16.mxu0 0
    %141 = vmatpush1.bf16.msra.mxu0 0
    %142 = vmatprep.subr.bf16.mxu0 0
    %143 = vmatpush1.bf16.msra.mxu0 0
    %144 = vmatprep.subr.bf16.mxu0 0
    %145 = vmatpush1.bf16.msra.mxu0 0
    %146 = vmatprep.subr.bf16.mxu0 0
    %147 = vmatpush1.bf16.msra.mxu0 0
    %148 = vmatprep.subr.bf16.mxu0 0
    %149 = vmatpush1.bf16.msra.mxu0 0
    %150 = vmatprep.subr.bf16.mxu0 0
    %151 = vmatpush1.bf16.msra.mxu0 0
    %152 = vmatprep.mubr.bf16.mxu0 0
    %153 = vmatmul.mubr.bf16.gmra.mrb[0].mxu0 %v118
    %v154 = vpop.f32.mrb[0].mxu0
    %v155 = vadd.f32 %v102, %v154
    %v156 = vpop.f32.mrb[0].mxu0
    %v157 = vpop.f32.mrb[0].mxu0
    %v158 = vpop.f32.mrb[0].mxu0
    %159 = vdwg.mxu0
    %v160 = vmax.f32 %v155, 0.0
    %v161 = vpack.c.bf16 %v160, %v160
    %v162 = vld [vmem:[#allocation8] sm:$0xf]
    %v163 = vld [vmem:[#allocation8 + $0x4] sm:$0xf]
    %v164 = vld [vmem:[#allocation8 + $0x8] sm:$0xf]
    %v165 = vld [vmem:[#allocation8 + $0xc] sm:$0xf]
    %v166 = vld [vmem:[%s4] sm:$0x1]
    %v168 = vlaneseq
    %v169 = vshrl.u32 %v168, 7
    %v170 = vsub.s32 0, %v169
    %v171 = vrot.slane %v166, %v170
    %v177 = vunpack.c.l.b16 %v162
    %v178 = vunpack.c.l.b16 %v163
    %v179 = vunpack.c.l.b16 %v164
    %v180 = vunpack.c.l.b16 %v165
    %v181 = vpack.c.b16 %v178, %v177
    %v182 = vpack.c.b16 %v180, %v179
    %v186 = vsel %vm116, %v161, 0
    %188 = vmatprep.subr.bf16.mxu0 0
    %189 = vmatpush1.bf16.msra.mxu0 %v181
    %190 = vmatprep.subr.bf16.mxu0 0
    %191 = vmatpush1.bf16.msra.mxu0 %v182
    %192 = vmatprep.subr.bf16.mxu0 0
    %193 = vmatpush1.bf16.msra.mxu0 0
    %194 = vmatprep.subr.bf16.mxu0 0
    %195 = vmatpush1.bf16.msra.mxu0 0
    %196 = vmatprep.subr.bf16.mxu0 0
    %197 = vmatpush1.bf16.msra.mxu0 0
    %198 = vmatprep.subr.bf16.mxu0 0
    %199 = vmatpush1.bf16.msra.mxu0 0
    %200 = vmatprep.subr.bf16.mxu0 0
    %201 = vmatpush1.bf16.msra.mxu0 0
    %202 = vmatprep.subr.bf16.mxu0 0
    %203 = vmatpush1.bf16.msra.mxu0 0
    %204 = vmatprep.subr.bf16.mxu0 0
    %205 = vmatpush1.bf16.msra.mxu0 0
    %206 = vmatprep.subr.bf16.mxu0 0
    %207 = vmatpush1.bf16.msra.mxu0 0
    %208 = vmatprep.subr.bf16.mxu0 0
    %209 = vmatpush1.bf16.msra.mxu0 0
    %210 = vmatprep.subr.bf16.mxu0 0
    %211 = vmatpush1.bf16.msra.mxu0 0
    %212 = vmatprep.subr.bf16.mxu0 0
    %213 = vmatpush1.bf16.msra.mxu0 0
    %214 = vmatprep.subr.bf16.mxu0 0
    %215 = vmatpush1.bf16.msra.mxu0 0
    %216 = vmatprep.subr.bf16.mxu0 0
    %217 = vmatpush1.bf16.msra.mxu0 0
    %218 = vmatprep.subr.bf16.mxu0 0
    %219 = vmatpush1.bf16.msra.mxu0 0
    %220 = vmatprep.mubr.bf16.mxu0 0
    %221 = vmatmul.mubr.bf16.gmra.mrb[0].mxu0 %v186
    %v222 = vpop.f32.mrb[0].mxu0
    %v223 = vadd.f32 %v171, %v222
    %v224 = vpop.f32.mrb[0].mxu0
    %v225 = vpop.f32.mrb[0].mxu0
    %v226 = vpop.f32.mrb[0].mxu0
    %227 = vdwg.mxu0
    %v228 = vmax.f32 %v223, 0.0
    %v229 = vpack.c.bf16 %v228, %v228
    %v230 = vld [vmem:[%s5] sm:$0xf]
    %v231 = vld [vmem:[%s5 + $0x4] sm:$0xf]
    %v232 = vld [vmem:[%s5 + $0x8] sm:$0xf]
    %v233 = vld [vmem:[%s5 + $0xc] sm:$0xf]
    %v234 = vld [vmem:[%s6] sm:$0x1]
    %v236 = vlaneseq
    %v237 = vshrl.u32 %v236, 7
    %v238 = vsub.s32 0, %v237
    %v239 = vrot.slane %v234, %v238
    %v245 = vunpack.c.l.b16 %v230
    %v246 = vunpack.c.l.b16 %v231
    %v247 = vunpack.c.l.b16 %v232
    %v248 = vunpack.c.l.b16 %v233
    %v249 = vpack.c.b16 %v246, %v245
    %v250 = vpack.c.b16 %v248, %v247
    %v254 = vsel %vm116, %v229, 0
    %256 = vmatprep.subr.bf16.mxu0 0
    %257 = vmatpush1.bf16.msra.mxu0 %v249
    %258 = vmatprep.subr.bf16.mxu0 0
    %259 = vmatpush1.bf16.msra.mxu0 %v250
    %260 = vmatprep.subr.bf16.mxu0 0
    %261 = vmatpush1.bf16.msra.mxu0 0
    %262 = vmatprep.subr.bf16.mxu0 0
    %263 = vmatpush1.bf16.msra.mxu0 0
    %264 = vmatprep.subr.bf16.mxu0 0
    %265 = vmatpush1.bf16.msra.mxu0 0
    %266 = vmatprep.subr.bf16.mxu0 0
    %267 = vmatpush1.bf16.msra.mxu0 0
    %268 = vmatprep.subr.bf16.mxu0 0
    %269 = vmatpush1.bf16.msra.mxu0 0
    %270 = vmatprep.subr.bf16.mxu0 0
    %271 = vmatpush1.bf16.msra.mxu0 0
    %272 = vmatprep.subr.bf16.mxu0 0
    %273 = vmatpush1.bf16.msra.mxu0 0
    %274 = vmatprep.subr.bf16.mxu0 0
    %275 = vmatpush1.bf16.msra.mxu0 0
    %276 = vmatprep.subr.bf16.mxu0 0
    %277 = vmatpush1.bf16.msra.mxu0 0
    %278 = vmatprep.subr.bf16.mxu0 0
    %279 = vmatpush1.bf16.msra.mxu0 0
    %280 = vmatprep.subr.bf16.mxu0 0
    %281 = vmatpush1.bf16.msra.mxu0 0
    %282 = vmatprep.subr.bf16.mxu0 0
    %283 = vmatpush1.bf16.msra.mxu0 0
    %284 = vmatprep.subr.bf16.mxu0 0
    %285 = vmatpush1.bf16.msra.mxu0 0
    %286 = vmatprep.subr.bf16.mxu0 0
    %287 = vmatpush1.bf16.msra.mxu0 0
    %288 = vmatprep.mubr.bf16.mxu0 0
    %289 = vmatmul.mubr.bf16.gmra.mrb[0].mxu0 %v254
    %v290 = vpop.f32.mrb[0].mxu0
    %v291 = vadd.f32 %v239, %v290
    %v292 = vpop.f32.mrb[0].mxu0
    %v293 = vpop.f32.mrb[0].mxu0
    %v294 = vpop.f32.mrb[0].mxu0
    %295 = vdwg.mxu0
    %v296 = vmax.f32 %v291, 0.0
    %v297 = vpack.c.bf16 %v296, %v296
    %v298 = vld [vmem:[#allocation9] sm:$0xf]
    %v299 = vld [vmem:[#allocation9 + $0x4] sm:$0xf]
    %v300 = vld [vmem:[#allocation9 + $0x8] sm:$0xf]
    %v301 = vld [vmem:[#allocation9 + $0xc] sm:$0xf]
    %v302 = vld [vmem:[%s8] sm:$0x1]
    %v304 = vlaneseq
    %v305 = vshrl.u32 %v304, 7
    %v306 = vsub.s32 0, %v305
    %v307 = vrot.slane %v302, %v306
    %v313 = vunpack.c.l.b16 %v298
    %v314 = vunpack.c.l.b16 %v299
    %v315 = vunpack.c.l.b16 %v300
    %v316 = vunpack.c.l.b16 %v301
    %v317 = vpack.c.b16 %v314, %v313
    %v318 = vpack.c.b16 %v316, %v315
    %v322 = vsel %vm116, %v297, 0
    %324 = vmatprep.subr.bf16.mxu0 0
    %325 = vmatpush1.bf16.msra.mxu0 %v317
    %326 = vmatprep.subr.bf16.mxu0 0
    %327 = vmatpush1.bf16.msra.mxu0 %v318
    %328 = vmatprep.subr.bf16.mxu0 0
    %329 = vmatpush1.bf16.msra.mxu0 0
    %330 = vmatprep.subr.bf16.mxu0 0
    %331 = vmatpush1.bf16.msra.mxu0 0
    %332 = vmatprep.subr.bf16.mxu0 0
    %333 = vmatpush1.bf16.msra.mxu0 0
    %334 = vmatprep.subr.bf16.mxu0 0
    %335 = vmatpush1.bf16.msra.mxu0 0
    %336 = vmatprep.subr.bf16.mxu0 0
    %337 = vmatpush1.bf16.msra.mxu0 0
    %338 = vmatprep.subr.bf16.mxu0 0
    %339 = vmatpush1.bf16.msra.mxu0 0
    %340 = vmatprep.subr.bf16.mxu0 0
    %341 = vmatpush1.bf16.msra.mxu0 0
    %342 = vmatprep.subr.bf16.mxu0 0
    %343 = vmatpush1.bf16.msra.mxu0 0
    %344 = vmatprep.subr.bf16.mxu0 0
    %345 = vmatpush1.bf16.msra.mxu0 0
    %346 = vmatprep.subr.bf16.mxu0 0
    %347 = vmatpush1.bf16.msra.mxu0 0
    %348 = vmatprep.subr.bf16.mxu0 0
    %349 = vmatpush1.bf16.msra.mxu0 0
    %350 = vmatprep.subr.bf16.mxu0 0
    %351 = vmatpush1.bf16.msra.mxu0 0
    %352 = vmatprep.subr.bf16.mxu0 0
    %353 = vmatpush1.bf16.msra.mxu0 0
    %354 = vmatprep.subr.bf16.mxu0 0
    %355 = vmatpush1.bf16.msra.mxu0 0
    %356 = vmatprep.mubr.bf16.mxu0 0
    %357 = vmatmul.mubr.bf16.gmra.mrb[0].mxu0 %v322
    %v358 = vpop.f32.mrb[0].mxu0
    %v359 = vadd.f32 %v307, %v358
    %v360 = vpop.f32.mrb[0].mxu0
    %v361 = vpop.f32.mrb[0].mxu0
    %v362 = vpop.f32.mrb[0].mxu0
    %363 = vdwg.mxu0
    %364 = vmax.xlane.f32.xlu0 %v359
    %v365 = vpop.xlane.xlu0 %364
    %v366 = vsub.f32 %v359, %v365
    %v367 = vmul.f32 %v366, 1.442695
    %v368 = vpow.pop %v367
    %369 = vadd.xlane.f32.xlu0 %v368
    %v370 = vpop.xlane.xlu0 %369
    %v371 = vrcp.pop %v370
    %s372 = sld [smem:[#allocation2]]
    %v373 = vstv %s372
    %v374 = vmul.f32 %v371, %v373
    %v375 = vmul.f32 %v368, %v374
    %v376 = vpack.c.bf16 %v375, %v375
    %377 = vst [vmem:[#allocation11] sm:$0xf] %v376
    // Predicated region
    $region58: #{tpu_custom_call.1} parent=1 // pred_check
      _
    $region59: #{tpu_custom_call.1} parent=1 // pred_check_branch
      %379 = sbr.rel (0) target = $region61
    $region60: #{tpu_custom_call.1} parent=1 // pred_region
      %s381 = ssub.s32 64, 64
      %382 = vsyncadd [#allocation5], %s381
      %s384 = sshll.u32 [#allocation11], 4
      %s385 = int_to_ptr.vmem [resolvable:$true] %s384
      %387 = dma.vmem_to_hbm [thread:$0]  %s385, 64, %s10, [#allocation5]
    $region61: #{tpu_custom_call.1} parent=1 // pred_fallthru
      _
    // Predicated region
    $region62: #{tpu_custom_call.1} parent=1 // pred_check
      _
    $region63: #{tpu_custom_call.1} parent=1 // pred_check_branch
      %389 = sbr.rel (0) target = $region65
    $region64: #{tpu_custom_call.1} parent=1 // pred_region
      %390 = dma.done [#allocation5], 64
    $region65: #{tpu_custom_call.1} parent=1 // pred_fallthru
      _
    %391 = vsyncpa [#allocation4], 1
    %392 = vsyncpa [#allocation7], 1
    %393 = vsyncpa [#allocation10], 1
    %394 = vsyncpa [#allocation5], 1

</llo_original>
